<compile_context>
chip_gen: v6e
topology: v6e:2x2x1
jax: 0.10.0
libtpu: 0.0.40
codegen_flags: <defaults>
</compile_context>

<pallas_src>
import math

import jax
import jax.numpy as jnp
from jax import lax
from jax.experimental import pallas as pl
from jax.experimental.pallas import tpu as pltpu

EMBED_DIM = 128
N_HEADS = 8
HEAD_DEPTH = EMBED_DIM // N_HEADS
CLIP = 10.0
NEG_INF = -1e9

# K1 / V / K2' / Q_fixed are re-read from HBM on every decode step; bf16
# storage halves that traffic.  float32 here recovers tight fp32 agreement.
KV_STORAGE_DTYPE = jnp.bfloat16
VMEM_LIMIT = 32 * 1024 * 1024


# ----------------------------------------------------------------------------
# Kernel 1: compute_static
#   packed = node @ [Wk1^T | Wv^T | Wk2^T @ Wout]   -> (B*N, 3D)  (bf16)
#   Q_fixed = graph_embedding @ Wq_fixed^T          -> (B, D)     (bf16)
# The PyTorch .repeat(1, n_car, 1, 1) of Q_fixed is materialized once (cheap,
# static) so the dynamic kernel reads it as a flat (B*n_car, D) row slab.
# ----------------------------------------------------------------------------
def _static_kernel(node_ref, wkvk_ref, kvk_ref):
    x = node_ref[...].astype(jnp.bfloat16)                       # bf16 MXU operand
    y = jnp.dot(x, wkvk_ref[...], preferred_element_type=jnp.float32)
    kvk_ref[...] = y.astype(kvk_ref.dtype)


def _qfixed_kernel(graph_ref, wqf_ref, qf_ref):
    g = graph_ref[...].astype(jnp.bfloat16)
    qf_ref[...] = jnp.dot(g, wqf_ref[...],
                          preferred_element_type=jnp.float32).astype(qf_ref.dtype)


def _pick_row_tile(total, target=512):
    # largest divisor of `total` that is <= target and sublane-aligned,
    # otherwise fall back to one full-array block (always legal).
    if total <= target:
        return total
    best = None
    for d in range(target, 0, -1):
        if total % d == 0:
            if d % 16 == 0:
                return d
            if best is None and d % 8 == 0:
                best = d
    return best if best is not None else total


def compute_static(node_emb, graph_emb, wkvk_t, wqf_t, n_car, *, row_tile=512):
    B, N, D = node_emb.shape
    BN = B * N
    node_flat = node_emb.reshape(BN, D)                          # free reshape
    tm = _pick_row_tile(BN, row_tile)

    kvk = pl.pallas_call(
        _static_kernel,
        out_shape=jax.ShapeDtypeStruct((BN, 3 * D), KV_STORAGE_DTYPE),
        grid=(BN // tm,),
        in_specs=[pl.BlockSpec((tm, D), lambda i: (i, 0)),
                  pl.BlockSpec((D, 3 * D), lambda i: (0, 0))],
        out_specs=pl.BlockSpec((tm, 3 * D), lambda i: (i, 0)),
        compiler_params=pltpu.CompilerParams(
            dimension_semantics=("parallel",),
            vmem_limit_bytes=VMEM_LIMIT),
    )(node_flat, wkvk_t)

    qf = pl.pallas_call(
        _qfixed_kernel,
        out_shape=jax.ShapeDtypeStruct((B, D), KV_STORAGE_DTYPE),
        grid=(1,),
        in_specs=[pl.BlockSpec((B, D), lambda i: (0, 0)),
                  pl.BlockSpec((D, D), lambda i: (0, 0))],
        out_specs=pl.BlockSpec((B, D), lambda i: (0, 0)),
        compiler_params=pltpu.CompilerParams(
            dimension_semantics=("arbitrary",),
            vmem_limit_bytes=VMEM_LIMIT),
    )(graph_emb, wqf_t)

    # car-repeat of Q_fixed (matches the PyTorch .repeat), flattened to rows.
    qf_rows = jnp.broadcast_to(qf[:, None, :], (B, n_car, D)).reshape(B * n_car, D)
    return kvk.reshape(B, N, 3 * D), qf_rows


# ----------------------------------------------------------------------------
# Kernel 2: compute_dynamic (one decode step, TB batches per grid step)
#   Q1 = Q_fixed + step_context @ Wq_step^T     (128-aligned matmul + rank-1)
#   heads = MHA(Q1, K1, V, mask)                (need_W=False -> raw concat)
#   logits = clip * tanh(heads @ (K2 Wout)^T / sqrt(D)) masked to -1e9
#   log_p = log_softmax over the flattened (n_car * n_node) axis, per batch
# ----------------------------------------------------------------------------
def _dynamic_kernel(qf_ref, kvk_ref, ctxm_ref, ctxe_ref, mask_ref,
                    wqsm_ref, wqsl_ref, logp_ref):
    D = EMBED_DIM
    dh = HEAD_DEPTH
    tb, n_car, N = mask_ref.shape

    # --- per-step context projection on the flattened (tb*n_car, D) slab ---
    ctx_bf = ctxm_ref[...].astype(jnp.bfloat16)                  # (tb*n_car, D)
    q_step = jnp.dot(ctx_bf, wqsm_ref[...],
                     preferred_element_type=jnp.float32)         # (tb*n_car, D)
    # rank-1 update for the 129th context column (kept off the MXU / f32 VPU)
    q_step = q_step + ctxe_ref[...] * wqsl_ref[...]
    q1_rows = (qf_ref[...].astype(jnp.float32) + q_step).astype(jnp.bfloat16)
    # regroup rows into (tb, n_car, D) for the per-batch batched attention dots
    q1 = jnp.stack([q1_rows[b * n_car:(b + 1) * n_car, :] for b in range(tb)],
                   axis=0)                                       # (tb, n_car, D) bf16

    # --- packed static projections, sliced directly in bf16 ---
    k1 = kvk_ref[:, :, pl.ds(0, D)]                              # (tb, N, D) bf16
    v = kvk_ref[:, :, pl.ds(D, D)]                               # (tb, N, D) bf16
    k2w = kvk_ref[:, :, pl.ds(2 * D, D)]                         # K2 @ Wout (folded)

    maskf = mask_ref[...].astype(jnp.float32)                    # (tb, n_car, N)
    bias = maskf * NEG_INF                                       # hoisted, reused per head

    inv_sqrt_dh = 1.0 / math.sqrt(dh)
    head_outs = []
    for h in range(N_HEADS):
        sl = slice(h * dh, (h + 1) * dh)
        s = jnp.einsum('bqd,bkd->bqk', q1[:, :, sl], k1[:, :, sl],
                       preferred_element_type=jnp.float32)       # (tb, n_car, N)
        s = s * inv_sqrt_dh + bias
        m = jnp.max(s, axis=-1, keepdims=True)
        p = jnp.exp(s - m)
        attn = p * pl.reciprocal(jnp.sum(p, axis=-1, keepdims=True), approx=True)
        head_outs.append(jnp.einsum('bqk,bkd->bqd', attn.astype(jnp.bfloat16),
                                    v[:, :, sl],
                                    preferred_element_type=jnp.float32))
    heads = jnp.concatenate(head_outs, axis=-1).astype(jnp.bfloat16)  # (tb, n_car, D)

    # single-head attention with return_logits=True: clip * tanh, then mask
    logits = jnp.einsum('bqd,bkd->bqk', heads, k2w,
                        preferred_element_type=jnp.float32)      # (tb, n_car, N)
    logits = CLIP * jnp.tanh(logits * (1.0 / math.sqrt(D)))
    logits = jnp.where(maskf > 0.5, NEG_INF, logits)

    # per-batch log_softmax over the flattened (n_car * N) axis
    mx = jnp.max(jnp.max(logits, axis=2, keepdims=True), axis=1, keepdims=True)
    se = jnp.sum(jnp.sum(jnp.exp(logits - mx), axis=2, keepdims=True),
                 axis=1, keepdims=True)
    logp_ref[...] = logits - (mx + jnp.log(se))


def _pick_batch_tile(B, n_car, target=8):
    # largest tb <= target that divides B, keeps the blocked grid >= 2 when
    # possible (both v7x TensorCores busy) and keeps the flattened
    # (tb * n_car) row-block 8-sublane aligned.
    cap = max(1, min(target, B // 2)) if B > 1 else 1
    for tb in range(cap, 0, -1):
        if B % tb == 0 and ((tb * n_car) % 8 == 0 or tb == B):
            return tb
    return B   # one full-array block is always legal


def compute_dynamic(qf_rows, kvk, step_ctx, mask, wqs_main, wqs_last,
                    *, batch_tile=8):
    B, N, D3 = kvk.shape
    D = D3 // 3
    n_car = step_ctx.shape[1]
    ctx_rows = step_ctx.reshape(B * n_car, D + 1)                # free reshape
    ctx_main = ctx_rows[:, :D]                                   # (B*n_car, D)
    ctx_extra = ctx_rows[:, D:]                                  # (B*n_car, 1)
    tb = _pick_batch_tile(B, n_car, batch_tile)

    logp = pl.pallas_call(
        _dynamic_kernel,
        out_shape=jax.ShapeDtypeStruct((B, n_car, N), jnp.float32),
        grid=(B // tb,),
        in_specs=[
            pl.BlockSpec((tb * n_car, D), lambda b: (b, 0)),     # Q_fixed rows (bf16)
            pl.BlockSpec((tb, N, 3 * D), lambda b: (b, 0, 0)),   # packed K1|V|K2@Wout
            pl.BlockSpec((tb * n_car, D), lambda b: (b, 0)),     # ctx[..., :D] rows
            pl.BlockSpec((tb * n_car, 1), lambda b: (b, 0)),     # ctx[..., D:] rows
            pl.BlockSpec((tb, n_car, N), lambda b: (b, 0, 0)),   # mask (int8)
            pl.BlockSpec((D, D), lambda b: (0, 0)),              # Wq_step^T[:D] (bf16)
            pl.BlockSpec((1, D), lambda b: (0, 0)),              # Wq_step^T[D:] (f32)
        ],
        out_specs=pl.BlockSpec((tb, n_car, N), lambda b: (b, 0, 0)),
        compiler_params=pltpu.CompilerParams(
            dimension_semantics=("parallel",),                   # 2 TCs on v7x
            vmem_limit_bytes=VMEM_LIMIT),
    )(qf_rows, kvk, ctx_main, ctx_extra, mask, wqs_main, wqs_last)
    return logp.reshape(B, n_car * N)                            # == .view(batch, -1)


# ----------------------------------------------------------------------------
# Pure-JAX reference (correctness check of the Pallas path)
# ----------------------------------------------------------------------------
def _reference(node, graph, ctx, mask, W, kv_storage_dtype=None, fold_wout=False):
    HI = lax.Precision.HIGHEST
    Wk1, Wv, Wk2, Wqf, Wout, Wqs = W

    def proj(x, w):                                              # x @ w.T
        return jnp.einsum('bni,oi->bno', x, w, precision=HI)

    K1 = proj(node, Wk1)
    V = proj(node, Wv)
    K2 = proj(node, Wk2)
    Qf = proj(graph[:, None, :], Wqf)                            # (B, 1, D)
    if fold_wout:                                                # K2' = K2 @ Wout
        K2 = jnp.einsum('bnd,do->bno', K2, Wout, precision=HI)
    if kv_storage_dtype is not None:
        cast = lambda t: t.astype(kv_storage_dtype).astype(jnp.float32)
        K1, V, K2, Qf = map(cast, (K1, V, K2, Qf))
    Qs = jnp.einsum('bci,oi->bco', ctx, Wqs, precision=HI)       # (B, n_car, D)
    Q1 = Qf + Qs
    B, n_car, D = Q1.shape
    N = node.shape[1]
    Q1h = Q1.reshape(B, n_car, N_HEADS, HEAD_DEPTH)
    K1h = K1.reshape(B, N, N_HEADS, HEAD_DEPTH)
    Vh = V.reshape(B, N, N_HEADS, HEAD_DEPTH)
    sc = jnp.einsum('bchd,bnhd->bchn', Q1h, K1h, precision=HI) / math.sqrt(HEAD_DEPTH)
    sc = jnp.where(mask[:, :, None, :] > 0, NEG_INF, sc)
    attn = jax.nn.softmax(sc, axis=-1)
    out = jnp.einsum('bchn,bnhd->bchd', attn, Vh, precision=HI).reshape(B, n_car, D)
    Q2 = out if fold_wout else jnp.einsum('bcd,od->bco', out, Wout, precision=HI)
    logits = CLIP * jnp.tanh(
        jnp.einsum('bcd,bnd->bcn', Q2, K2, precision=HI) / math.sqrt(D))
    logits = jnp.where(mask > 0, NEG_INF, logits)
    return jax.nn.log_softmax(logits.reshape(B, -1), axis=-1)


if __name__ == "__main__":
    B, N, n_car, D = 16, 16, 2, EMBED_DIM
    HI = lax.Precision.HIGHEST

    key = jax.random.PRNGKey(0)
    keys = jax.random.split(key, 8)

    def linear_w(k, out_dim, in_dim):
        bound = 1.0 / math.sqrt(in_dim)
        return jax.random.uniform(k, (out_dim, in_dim), jnp.float32, -bound, bound)

    # PyTorch nn.Linear weights are (out, in); y = x @ W^T
    Wk1 = linear_w(keys[0], D, D)
    Wv = linear_w(keys[1], D, D)
    Wk2 = linear_w(keys[2], D, D)
    Wqf = linear_w(keys[3], D, D)
    Wout = linear_w(keys[4], D, D)
    Wqs = linear_w(keys[5], D, D + 1)

    node_emb = jax.random.normal(keys[6], (B, N, D), jnp.float32)
    graph_emb = jnp.mean(node_emb, axis=1)                       # (B, D)
    step_ctx = jax.random.normal(keys[7], (B, n_car, D + 1), jnp.float32)
    # deterministic mask: depot (node 0) masked at t1 for every car; int8, 1 = masked
    mask = jnp.zeros((B, n_car, N), jnp.int8).at[:, :, 0].set(1)

    # One-time weight glue: fold Wout into the K2 block (K2' = K2 @ Wout), fuse
    # Wk1/Wv/Wk2' into one (D, 3D) bf16 operand, split Wq_step^T into its
    # 128-aligned bf16 block + last f32 row (rank-1 part).
    Wk2_fold = jnp.dot(Wk2.T, Wout, precision=HI)                # node @ this == K2 @ Wout
    Wkvk_t = jnp.concatenate([Wk1.T, Wv.T, Wk2_fold], axis=1).astype(jnp.bfloat16)
    Wqf_t = Wqf.T.astype(jnp.bfloat16)
    Wqs_t = Wqs.T                                                # (D+1, D) f32
    Wqs_main = Wqs_t[:D, :].astype(jnp.bfloat16)                 # (D, D) bf16 MXU operand
    Wqs_last = Wqs_t[D:, :]                                      # (1, D) f32 rank-1 part

    kvk, qf_rows = compute_static(node_emb, graph_emb, Wkvk_t, Wqf_t, n_car)
    log_p = compute_dynamic(qf_rows, kvk, step_ctx, mask, Wqs_main, Wqs_last)
    log_p = jax.block_until_ready(log_p)

    assert log_p.shape == (B, n_car * N)

    W = (Wk1, Wv, Wk2, Wqf, Wout, Wqs)
    # Kernel-math check: reference using the same Wout fold + bf16 storage.
    ref_match = _reference(node_emb, graph_emb, step_ctx, mask, W,
                           kv_storage_dtype=KV_STORAGE_DTYPE, fold_wout=True)
    err_match = float(jnp.max(jnp.abs(log_p - ref_match)))
    assert err_match < 1.5e-1, f"mismatch vs bf16-storage reference: {err_match}"
    # Precision-envelope check vs pure fp32 module math (bf16 storage / bf16
    # MXU operands amplified by the x10 clip*tanh logit head).
    ref_f32 = _reference(node_emb, graph_emb, step_ctx, mask, W)
    err_f32 = float(jnp.max(jnp.abs(log_p - ref_f32)))
    assert err_f32 < 3e-1, f"mismatch vs fp32 reference: {err_f32}"
    # log_softmax output must be a normalized distribution.
    assert bool(jnp.allclose(jnp.sum(jnp.exp(log_p), axis=-1), 1.0, atol=1e-3))

    # TODO(synk): the autoregressive decode loop (Env state transitions,
    # TopK/Categorical sampling, cost / log-likelihood accumulation) depends on
    # an Env class not provided in the module source; only the per-step
    # compute_static / compute_dynamic hot path is implemented as Pallas
    # kernels.
    print("KERNEL_OK")
</pallas_src>

<mosaic_0001>
module attributes {stable_mosaic.version = 11 : i64} {
  func.func @_static_kernel(%arg0: i32, %arg1: memref<256x128xf32, #tpu.memory_space<vmem>>, %arg2: memref<128x384xbf16, #tpu.memory_space<vmem>>, %arg3: memref<256x384xbf16, #tpu.memory_space<vmem>>) attributes {dimension_semantics = [#tpu.dimension_semantics<parallel>], iteration_bounds = array<i64: 1>, scalar_prefetch = 0 : i64, scratch_operands = 0 : i64, tpu.core_type = #tpu.core_type<tc>, window_params = [{transform_indices = @transform_0, window_bounds = array<i64: 256, 128>}, {pipeline_mode = #tpu.pipeline_mode<synchronous>, transform_indices = @transform_1, window_bounds = array<i64: 128, 384>}, {transform_indices = @transform_2, window_bounds = array<i64: 256, 384>}]} {
    %c0 = arith.constant 0 : index
    %c0_0 = arith.constant 0 : index
    %0 = vector.load %arg1[%c0, %c0_0] : memref<256x128xf32, #tpu.memory_space<vmem>>, vector<256x128xf32>
    %1 = arith.truncf %0 : vector<256x128xf32> to vector<256x128xbf16>
    %c0_1 = arith.constant 0 : index
    %c0_2 = arith.constant 0 : index
    %2 = vector.load %arg2[%c0_1, %c0_2] : memref<128x384xbf16, #tpu.memory_space<vmem>>, vector<128x384xbf16>
    %cst = arith.constant dense<0.000000e+00> : vector<256x384xf32>
    %3 = tpu.matmul %1, %2, %cst {dimension_numbers = #tpu.dot_dimension_numbers<[1], [0], [0], [1], [0, 0, 1, 1], [], []>} : vector<256x128xbf16>, vector<128x384xbf16>, vector<256x384xf32> -> vector<256x384xf32>
    %4 = arith.truncf %3 : vector<256x384xf32> to vector<256x384xbf16>
    %c0_3 = arith.constant 0 : index
    %c0_4 = arith.constant 0 : index
    %5 = vector.load %arg3[%c0_3, %c0_4] : memref<256x384xbf16, #tpu.memory_space<vmem>>, vector<256x384xbf16>
    tpu.vector_store %arg3[%c0_3, %c0_4], %4 {strides = array<i32>} : memref<256x384xbf16, #tpu.memory_space<vmem>>, vector<256x384xbf16>,
    return
  }
  func.func @transform_0(%arg0: i32) -> (i32, i32) {
    %c0_i32 = arith.constant 0 : i32
    %c0_i32_0 = arith.constant 0 : i32
    return %arg0, %c0_i32 : i32, i32
  }
  func.func @transform_1(%arg0: i32) -> (i32, i32) {
    %c0_i32 = arith.constant 0 : i32
    %c0_i32_0 = arith.constant 0 : i32
    %c0_i32_1 = arith.constant 0 : i32
    return %c0_i32, %c0_i32_0 : i32, i32
  }
  func.func @transform_2(%arg0: i32) -> (i32, i32) {
    %c0_i32 = arith.constant 0 : i32
    %c0_i32_0 = arith.constant 0 : i32
    return %arg0, %c0_i32 : i32, i32
  }
}

</mosaic_0001>

<llo_original>
// kernel: tpu_custom_call.1
$region0: #{tpu_custom_call.1}
  #allocation0 [shape = 'u32[]', space=smem, size = 0x4, offset = 0x4, fixed_abs, tag = 'smem constant byte address 0x4 - core index']
  #allocation1 [shape = 'u32[144,128]{1,0:T(1,128)}', space=vmem, size = 0x12000, scoped, tag = 'internal scratch']
  %s0 = inlined_call_operand.hbm [shape: f32[256,128], index: 0, kind: input, shape index: {}]
  %s1 = inlined_call_operand.hbm [shape: bf16[128,384], index: 1, kind: input, shape index: {}]
  %s2 = inlined_call_operand.hbm [shape: bf16[256,384], index: 2, kind: output, shape index: {}]
  %s3 = sld [smem:[#allocation0]]
  $region26: #{tpu_custom_call.1} parent=0
    _
  %s5 = ssub.s32 1, %s3
  %s6 = scalar_select 0, %s5, %s3
  $region1: #{tpu_custom_call.1} parent=0
    #allocation2 [shape = 'u8[131072]{0}', space=vmem, size = 0x20000, scoped, tag = 'input window, operand 0, single buffered']
    #allocation3 [shape = 's32[1]{0}', space=sflag, size = 0x4, scoped, tag = 'scoped memory for tpu_custom_call.1']
    #allocation4 [shape = 's32[1]{0}', space=sflag, size = 0x4, scoped, tag = 'scoped memory for tpu_custom_call.1']
    #allocation5 [shape = 'u8[98304]{0}', space=vmem, size = 0x18000, scoped, tag = 'input window, operand 1, single buffered']
    #allocation6 [shape = 's32[1]{0}', space=sflag, size = 0x4, scoped, tag = 'scoped memory for tpu_custom_call.1']
    #allocation7 [shape = 'u8[196608]{0}', space=vmem, size = 0x30000, scoped, tag = 'output window, operand 0, single buffered']
    %7 = vsyncpa [#allocation3], 0
    %8 = vsyncpa [#allocation6], 0
    %9 = vsyncpa [#allocation4], 0
    // Predicated region
    $region2: #{tpu_custom_call.1} parent=1 // pred_check
      _
    $region3: #{tpu_custom_call.1} parent=1 // pred_check_branch
      %11 = sbr.rel (0) target = $region5
    $region4: #{tpu_custom_call.1} parent=1 // pred_region
      %s13 = ssub.s32 4096, 4096
      %14 = vsyncadd [#allocation3], %s13
      %s15 = sshll.u32 [#allocation2], 4
      %s16 = int_to_ptr.vmem [resolvable:$true] %s15
      %21 = dma.hbm_to_vmem [thread:$0]  %s0, 4096, %s16, [#allocation3], 128, 128, 8
    $region5: #{tpu_custom_call.1} parent=1 // pred_fallthru
      _
    // Predicated region
    $region6: #{tpu_custom_call.1} parent=1 // pred_check
      _
    $region7: #{tpu_custom_call.1} parent=1 // pred_check_branch
      %23 = sbr.rel (0) target = $region9
    $region8: #{tpu_custom_call.1} parent=1 // pred_region
      %s25 = ssub.s32 3072, 3072
      %26 = vsyncadd [#allocation6], %s25
      %s27 = sshll.u32 [#allocation5], 4
      %s28 = int_to_ptr.vmem [resolvable:$true] %s27
      %33 = dma.hbm_to_vmem [thread:$0]  %s1, 3072, %s28, [#allocation6], 192, 192, 12
    $region9: #{tpu_custom_call.1} parent=1 // pred_fallthru
      _
    // Predicated region
    $region10: #{tpu_custom_call.1} parent=1 // pred_check
      _
    $region11: #{tpu_custom_call.1} parent=1 // pred_check_branch
      %35 = sbr.rel (0) target = $region13
    $region12: #{tpu_custom_call.1} parent=1 // pred_region
      %36 = dma.done [#allocation3], 4096
    $region13: #{tpu_custom_call.1} parent=1 // pred_fallthru
      _
    // Predicated region
    $region14: #{tpu_custom_call.1} parent=1 // pred_check
      _
    $region15: #{tpu_custom_call.1} parent=1 // pred_check_branch
      %38 = sbr.rel (0) target = $region17
    $region16: #{tpu_custom_call.1} parent=1 // pred_region
      %39 = dma.done [#allocation6], 3072
    $region17: #{tpu_custom_call.1} parent=1 // pred_fallthru
      _
    %v41 = vld [vmem:[#allocation2] sm:$0xff]
    %v42 = vld [vmem:[#allocation2 + $0x8] sm:$0xff]
    %v43 = vld [vmem:[#allocation2 + $0x10] sm:$0xff]
    %v44 = vld [vmem:[#allocation2 + $0x18] sm:$0xff]
    %v45 = vld [vmem:[#allocation2 + $0x20] sm:$0xff]
    %v46 = vld [vmem:[#allocation2 + $0x28] sm:$0xff]
    %v47 = vld [vmem:[#allocation2 + $0x30] sm:$0xff]
    %v48 = vld [vmem:[#allocation2 + $0x38] sm:$0xff]
    %v49 = vld [vmem:[#allocation2 + $0x40] sm:$0xff]
    %v50 = vld [vmem:[#allocation2 + $0x48] sm:$0xff]
    %v51 = vld [vmem:[#allocation2 + $0x50] sm:$0xff]
    %v52 = vld [vmem:[#allocation2 + $0x58] sm:$0xff]
    %v53 = vld [vmem:[#allocation2 + $0x60] sm:$0xff]
    %v54 = vld [vmem:[#allocation2 + $0x68] sm:$0xff]
    %v55 = vld [vmem:[#allocation2 + $0x70] sm:$0xff]
    %v56 = vld [vmem:[#allocation2 + $0x78] sm:$0xff]
    %v57 = vld [vmem:[#allocation2 + $0x80] sm:$0xff]
    %v58 = vld [vmem:[#allocation2 + $0x88] sm:$0xff]
    %v59 = vld [vmem:[#allocation2 + $0x90] sm:$0xff]
    %v60 = vld [vmem:[#allocation2 + $0x98] sm:$0xff]
    %v61 = vld [vmem:[#allocation2 + $0xa0] sm:$0xff]
    %v62 = vld [vmem:[#allocation2 + $0xa8] sm:$0xff]
    %v63 = vld [vmem:[#allocation2 + $0xb0] sm:$0xff]
    %v64 = vld [vmem:[#allocation2 + $0xb8] sm:$0xff]
    %v65 = vld [vmem:[#allocation2 + $0xc0] sm:$0xff]
    %v66 = vld [vmem:[#allocation2 + $0xc8] sm:$0xff]
    %v67 = vld [vmem:[#allocation2 + $0xd0] sm:$0xff]
    %v68 = vld [vmem:[#allocation2 + $0xd8] sm:$0xff]
    %v69 = vld [vmem:[#allocation2 + $0xe0] sm:$0xff]
    %v70 = vld [vmem:[#allocation2 + $0xe8] sm:$0xff]
    %v71 = vld [vmem:[#allocation2 + $0xf0] sm:$0xff]
    %v72 = vld [vmem:[#allocation2 + $0xf8] sm:$0xff]
    %v73 = vpack.c.bf16 %v42, %v41
    %v74 = vpack.c.bf16 %v44, %v43
    %v75 = vpack.c.bf16 %v46, %v45
    %v76 = vpack.c.bf16 %v48, %v47
    %v77 = vpack.c.bf16 %v50, %v49
    %v78 = vpack.c.bf16 %v52, %v51
    %v79 = vpack.c.bf16 %v54, %v53
    %v80 = vpack.c.bf16 %v56, %v55
    %v81 = vpack.c.bf16 %v58, %v57
    %v82 = vpack.c.bf16 %v60, %v59
    %v83 = vpack.c.bf16 %v62, %v61
    %v84 = vpack.c.bf16 %v64, %v63
    %v85 = vpack.c.bf16 %v66, %v65
    %v86 = vpack.c.bf16 %v68, %v67
    %v87 = vpack.c.bf16 %v70, %v69
    %v88 = vpack.c.bf16 %v72, %v71
    %v89 = vld [vmem:[#allocation5] sm:$0xff]
    %v90 = vld [vmem:[#allocation5 + $0x8] sm:$0xf]
    %v91 = vld [vmem:[#allocation5 + $0xc] sm:$0xff]
    %v92 = vld [vmem:[#allocation5 + $0x14] sm:$0xf]
    %v93 = vld [vmem:[#allocation5 + $0x18] sm:$0xff]
    %v94 = vld [vmem:[#allocation5 + $0x20] sm:$0xf]
    %v95 = vld [vmem:[#allocation5 + $0x24] sm:$0xff]
    %v96 = vld [vmem:[#allocation5 + $0x2c] sm:$0xf]
    %v97 = vld [vmem:[#allocation5 + $0x30] sm:$0xff]
    %v98 = vld [vmem:[#allocation5 + $0x38] sm:$0xf]
    %v99 = vld [vmem:[#allocation5 + $0x3c] sm:$0xff]
    %v100 = vld [vmem:[#allocation5 + $0x44] sm:$0xf]
    %v101 = vld [vmem:[#allocation5 + $0x48] sm:$0xff]
    %v102 = vld [vmem:[#allocation5 + $0x50] sm:$0xf]
    %v103 = vld [vmem:[#allocation5 + $0x54] sm:$0xff]
    %v104 = vld [vmem:[#allocation5 + $0x5c] sm:$0xf]
    %v105 = vld [vmem:[#allocation5 + $0x60] sm:$0xff]
    %v106 = vld [vmem:[#allocation5 + $0x68] sm:$0xf]
    %v107 = vld [vmem:[#allocation5 + $0x6c] sm:$0xff]
    %v108 = vld [vmem:[#allocation5 + $0x74] sm:$0xf]
    %v109 = vld [vmem:[#allocation5 + $0x78] sm:$0xff]
    %v110 = vld [vmem:[#allocation5 + $0x80] sm:$0xf]
    %v111 = vld [vmem:[#allocation5 + $0x84] sm:$0xff]
    %v112 = vld [vmem:[#allocation5 + $0x8c] sm:$0xf]
    %v113 = vld [vmem:[#allocation5 + $0x90] sm:$0xff]
    %v114 = vld [vmem:[#allocation5 + $0x98] sm:$0xf]
    %v115 = vld [vmem:[#allocation5 + $0x9c] sm:$0xff]
    %v116 = vld [vmem:[#allocation5 + $0xa4] sm:$0xf]
    %v117 = vld [vmem:[#allocation5 + $0xa8] sm:$0xff]
    %v118 = vld [vmem:[#allocation5 + $0xb0] sm:$0xf]
    %v119 = vld [vmem:[#allocation5 + $0xb4] sm:$0xff]
    %v120 = vld [vmem:[#allocation5 + $0xbc] sm:$0xf]
    %v153 = vunpack.c.l.b16 %v89
    %v154 = vunpack.c.h.b16 %v89
    %v155 = vunpack.c.l.b16 %v90
    %v156 = vunpack.c.l.b16 %v91
    %v157 = vunpack.c.h.b16 %v91
    %v158 = vunpack.c.l.b16 %v92
    %v159 = vunpack.c.l.b16 %v93
    %v160 = vunpack.c.h.b16 %v93
    %v161 = vunpack.c.l.b16 %v94
    %v162 = vunpack.c.l.b16 %v95
    %v163 = vunpack.c.h.b16 %v95
    %v164 = vunpack.c.l.b16 %v96
    %v165 = vunpack.c.l.b16 %v97
    %v166 = vunpack.c.h.b16 %v97
    %v167 = vunpack.c.l.b16 %v98
    %v168 = vunpack.c.l.b16 %v99
    %v169 = vunpack.c.h.b16 %v99
    %v170 = vunpack.c.l.b16 %v100
    %v171 = vunpack.c.l.b16 %v101
    %v172 = vunpack.c.h.b16 %v101
    %v173 = vunpack.c.l.b16 %v102
    %v174 = vunpack.c.l.b16 %v103
    %v175 = vunpack.c.h.b16 %v103
    %v176 = vunpack.c.l.b16 %v104
    %v177 = vunpack.c.l.b16 %v105
    %v178 = vunpack.c.h.b16 %v105
    %v179 = vunpack.c.l.b16 %v106
    %v180 = vunpack.c.l.b16 %v107
    %v181 = vunpack.c.h.b16 %v107
    %v182 = vunpack.c.l.b16 %v108
    %v183 = vunpack.c.l.b16 %v109
    %v184 = vunpack.c.h.b16 %v109
    %v185 = vunpack.c.l.b16 %v110
    %v186 = vunpack.c.l.b16 %v111
    %v187 = vunpack.c.h.b16 %v111
    %v188 = vunpack.c.l.b16 %v112
    %v189 = vunpack.c.l.b16 %v113
    %v190 = vunpack.c.h.b16 %v113
    %v191 = vunpack.c.l.b16 %v114
    %v192 = vunpack.c.l.b16 %v115
    %v193 = vunpack.c.h.b16 %v115
    %v194 = vunpack.c.l.b16 %v116
    %v195 = vunpack.c.l.b16 %v117
    %v196 = vunpack.c.h.b16 %v117
    %v197 = vunpack.c.l.b16 %v118
    %v198 = vunpack.c.l.b16 %v119
    %v199 = vunpack.c.h.b16 %v119
    %v200 = vunpack.c.l.b16 %v120
    %v201 = vpack.c.b16 %v156, %v153
    %v202 = vpack.c.b16 %v157, %v154
    %v203 = vpack.c.b16 %v158, %v155
    %v204 = vpack.c.b16 %v162, %v159
    %v205 = vpack.c.b16 %v163, %v160
    %v206 = vpack.c.b16 %v164, %v161
    %v207 = vpack.c.b16 %v168, %v165
    %v208 = vpack.c.b16 %v169, %v166
    %v209 = vpack.c.b16 %v170, %v167
    %v210 = vpack.c.b16 %v174, %v171
    %v211 = vpack.c.b16 %v175, %v172
    %v212 = vpack.c.b16 %v176, %v173
    %v213 = vpack.c.b16 %v180, %v177
    %v214 = vpack.c.b16 %v181, %v178
    %v215 = vpack.c.b16 %v182, %v179
    %v216 = vpack.c.b16 %v186, %v183
    %v217 = vpack.c.b16 %v187, %v184
    %v218 = vpack.c.b16 %v188, %v185
    %v219 = vpack.c.b16 %v192, %v189
    %v220 = vpack.c.b16 %v193, %v190
    %v221 = vpack.c.b16 %v194, %v191
    %v222 = vpack.c.b16 %v198, %v195
    %v223 = vpack.c.b16 %v199, %v196
    %v224 = vpack.c.b16 %v200, %v197
    %249 = vmatprep.subr.bf16.mxu0 %v223
    %250 = vmatpush1.bf16.msra.mxu0 %v222
    %251 = vmatprep.subr.bf16.mxu0 %v220
    %252 = vmatpush1.bf16.msra.mxu0 %v219
    %253 = vmatprep.subr.bf16.mxu0 %v217
    %254 = vmatpush1.bf16.msra.mxu0 %v216
    %255 = vmatprep.subr.bf16.mxu0 %v214
    %256 = vmatpush1.bf16.msra.mxu0 %v213
    %257 = vmatprep.subr.bf16.mxu0 %v211
    %258 = vmatpush1.bf16.msra.mxu0 %v210
    %259 = vmatprep.subr.bf16.mxu0 %v208
    %260 = vmatpush1.bf16.msra.mxu0 %v207
    %261 = vmatprep.subr.bf16.mxu0 %v205
    %262 = vmatpush1.bf16.msra.mxu0 %v204
    %263 = vmatprep.subr.bf16.mxu0 %v202
    %264 = vmatpush1.bf16.msra.mxu0 %v201
    %265 = vmatprep.subr.bf16.mxu0 0
    %266 = vmatpush2.bf16.msra.mxu0 0
    %267 = vmatprep.subr.bf16.mxu0 0
    %268 = vmatpush2.bf16.msra.mxu0 0
    %269 = vmatprep.subr.bf16.mxu0 0
    %270 = vmatpush2.bf16.msra.mxu0 0
    %271 = vmatprep.subr.bf16.mxu0 0
    %272 = vmatpush2.bf16.msra.mxu0 0
    %273 = vmatprep.subr.bf16.mxu0 0
    %274 = vmatpush2.bf16.msra.mxu0 0
    %275 = vmatprep.subr.bf16.mxu0 0
    %276 = vmatpush2.bf16.msra.mxu0 0
    %277 = vmatprep.subr.bf16.mxu0 0
    %278 = vmatpush2.bf16.msra.mxu0 0
    %279 = vmatprep.subr.bf16.mxu0 0
    %280 = vmatpush2.bf16.msra.mxu0 0
    %281 = vmatprep.mubr.bf16.mxu0 0
    %282 = vmatmul.mubr.bf16.gmra.mxu0 %v73
    %v283 = vpop.f32.mrf.mxu0
    %v284 = vadd.f32 0.0, %v283
    %v285 = vpop.f32.mrf.mxu0
    %v286 = vadd.f32 0.0, %v285
    %v287 = vpop.f32.mrf.mxu0
    %v288 = vadd.f32 0.0, %v287
    %v289 = vpop.f32.mrf.mxu0
    %v290 = vadd.f32 0.0, %v289
    %291 = vmatprep.mubr.bf16.mxu0 0
    %292 = vmatmul.mubr.bf16.gmra.mxu0 %v74
    %v293 = vpop.f32.mrf.mxu0
    %v294 = vadd.f32 0.0, %v293
    %v295 = vpop.f32.mrf.mxu0
    %v296 = vadd.f32 0.0, %v295
    %v297 = vpop.f32.mrf.mxu0
    %v298 = vadd.f32 0.0, %v297
    %v299 = vpop.f32.mrf.mxu0
    %v300 = vadd.f32 0.0, %v299
    %301 = vmatprep.mubr.bf16.mxu0 0
    %302 = vmatmul.mubr.bf16.gmra.mxu0 %v75
    %v303 = vpop.f32.mrf.mxu0
    %v304 = vadd.f32 0.0, %v303
    %v305 = vpop.f32.mrf.mxu0
    %v306 = vadd.f32 0.0, %v305
    %v307 = vpop.f32.mrf.mxu0
    %v308 = vadd.f32 0.0, %v307
    %v309 = vpop.f32.mrf.mxu0
    %v310 = vadd.f32 0.0, %v309
    %311 = vmatprep.mubr.bf16.mxu0 0
    %312 = vmatmul.mubr.bf16.gmra.mxu0 %v76
    %v313 = vpop.f32.mrf.mxu0
    %v314 = vadd.f32 0.0, %v313
    %v315 = vpop.f32.mrf.mxu0
    %v316 = vadd.f32 0.0, %v315
    %v317 = vpop.f32.mrf.mxu0
    %v318 = vadd.f32 0.0, %v317
    %v319 = vpop.f32.mrf.mxu0
    %v320 = vadd.f32 0.0, %v319
    %321 = vmatprep.mubr.bf16.mxu0 0
    %322 = vmatmul.mubr.bf16.gmra.mxu0 %v77
    %v323 = vpop.f32.mrf.mxu0
    %v324 = vadd.f32 0.0, %v323
    %v325 = vpop.f32.mrf.mxu0
    %v326 = vadd.f32 0.0, %v325
    %v327 = vpop.f32.mrf.mxu0
    %v328 = vadd.f32 0.0, %v327
    %v329 = vpop.f32.mrf.mxu0
    %v330 = vadd.f32 0.0, %v329
    %331 = vmatprep.mubr.bf16.mxu0 0
    %332 = vmatmul.mubr.bf16.gmra.mxu0 %v78
    %v333 = vpop.f32.mrf.mxu0
    %v334 = vadd.f32 0.0, %v333
    %v335 = vpop.f32.mrf.mxu0
    %v336 = vadd.f32 0.0, %v335
    %v337 = vpop.f32.mrf.mxu0
    %v338 = vadd.f32 0.0, %v337
    %v339 = vpop.f32.mrf.mxu0
    %v340 = vadd.f32 0.0, %v339
    %341 = vmatprep.mubr.bf16.mxu0 0
    %342 = vmatmul.mubr.bf16.gmra.mxu0 %v79
    %v343 = vpop.f32.mrf.mxu0
    %v344 = vadd.f32 0.0, %v343
    %v345 = vpop.f32.mrf.mxu0
    %v346 = vadd.f32 0.0, %v345
    %v347 = vpop.f32.mrf.mxu0
    %v348 = vadd.f32 0.0, %v347
    %v349 = vpop.f32.mrf.mxu0
    %v350 = vadd.f32 0.0, %v349
    %351 = vmatprep.mubr.bf16.mxu0 0
    %352 = vmatmul.mubr.bf16.gmra.mxu0 %v80
    %v353 = vpop.f32.mrf.mxu0
    %v354 = vadd.f32 0.0, %v353
    %v355 = vpop.f32.mrf.mxu0
    %v356 = vadd.f32 0.0, %v355
    %v357 = vpop.f32.mrf.mxu0
    %v358 = vadd.f32 0.0, %v357
    %v359 = vpop.f32.mrf.mxu0
    %v360 = vadd.f32 0.0, %v359
    %361 = vmatprep.mubr.bf16.mxu0 0
    %362 = vmatmul.mubr.bf16.gmra.mxu0 %v81
    %v363 = vpop.f32.mrf.mxu0
    %v364 = vadd.f32 0.0, %v363
    %v365 = vpop.f32.mrf.mxu0
    %v366 = vadd.f32 0.0, %v365
    %v367 = vpop.f32.mrf.mxu0
    %v368 = vadd.f32 0.0, %v367
    %v369 = vpop.f32.mrf.mxu0
    %v370 = vadd.f32 0.0, %v369
    %371 = vmatprep.mubr.bf16.mxu0 0
    %372 = vmatmul.mubr.bf16.gmra.mxu0 %v82
    %v373 = vpop.f32.mrf.mxu0
    %v374 = vadd.f32 0.0, %v373
    %v375 = vpop.f32.mrf.mxu0
    %v376 = vadd.f32 0.0, %v375
    %v377 = vpop.f32.mrf.mxu0
    %v378 = vadd.f32 0.0, %v377
    %v379 = vpop.f32.mrf.mxu0
    %v380 = vadd.f32 0.0, %v379
    %381 = vmatprep.mubr.bf16.mxu0 0
    %382 = vmatmul.mubr.bf16.gmra.mxu0 %v83
    %v383 = vpop.f32.mrf.mxu0
    %v384 = vadd.f32 0.0, %v383
    %v385 = vpop.f32.mrf.mxu0
    %v386 = vadd.f32 0.0, %v385
    %v387 = vpop.f32.mrf.mxu0
    %v388 = vadd.f32 0.0, %v387
    %v389 = vpop.f32.mrf.mxu0
    %v390 = vadd.f32 0.0, %v389
    %391 = vmatprep.mubr.bf16.mxu0 0
    %392 = vmatmul.mubr.bf16.gmra.mxu0 %v84
    %v393 = vpop.f32.mrf.mxu0
    %v394 = vadd.f32 0.0, %v393
    %v395 = vpop.f32.mrf.mxu0
    %v396 = vadd.f32 0.0, %v395
    %v397 = vpop.f32.mrf.mxu0
    %v398 = vadd.f32 0.0, %v397
    %v399 = vpop.f32.mrf.mxu0
    %v400 = vadd.f32 0.0, %v399
    %401 = vmatprep.mubr.bf16.mxu0 0
    %402 = vmatmul.mubr.bf16.gmra.mxu0 %v85
    %v403 = vpop.f32.mrf.mxu0
    %v404 = vadd.f32 0.0, %v403
    %v405 = vpop.f32.mrf.mxu0
    %v406 = vadd.f32 0.0, %v405
    %v407 = vpop.f32.mrf.mxu0
    %v408 = vadd.f32 0.0, %v407
    %v409 = vpop.f32.mrf.mxu0
    %v410 = vadd.f32 0.0, %v409
    %411 = vmatprep.mubr.bf16.mxu0 0
    %412 = vmatmul.mubr.bf16.gmra.mxu0 %v86
    %v413 = vpop.f32.mrf.mxu0
    %v414 = vadd.f32 0.0, %v413
    %v415 = vpop.f32.mrf.mxu0
    %v416 = vadd.f32 0.0, %v415
    %v417 = vpop.f32.mrf.mxu0
    %v418 = vadd.f32 0.0, %v417
    %v419 = vpop.f32.mrf.mxu0
    %v420 = vadd.f32 0.0, %v419
    %421 = vmatprep.mubr.bf16.mxu0 0
    %422 = vmatmul.mubr.bf16.gmra.mxu0 %v87
    %v423 = vpop.f32.mrf.mxu0
    %v424 = vadd.f32 0.0, %v423
    %v425 = vpop.f32.mrf.mxu0
    %v426 = vadd.f32 0.0, %v425
    %v427 = vpop.f32.mrf.mxu0
    %v428 = vadd.f32 0.0, %v427
    %v429 = vpop.f32.mrf.mxu0
    %v430 = vadd.f32 0.0, %v429
    %431 = vmatprep.mubr.bf16.mxu0 0
    %432 = vmatmul.mubr.bf16.gmra.mxu0 %v88
    %v433 = vpop.f32.mrf.mxu0
    %v434 = vadd.f32 0.0, %v433
    %v435 = vpop.f32.mrf.mxu0
    %v436 = vadd.f32 0.0, %v435
    %v437 = vpop.f32.mrf.mxu0
    %v438 = vadd.f32 0.0, %v437
    %v439 = vpop.f32.mrf.mxu0
    %v440 = vadd.f32 0.0, %v439
    %441 = vdwg.mxu0
    %442 = vmatprep.subr.bf16.mxu0 0
    %443 = vmatpush1.bf16.msra.mxu0 %v224
    %444 = vmatprep.subr.bf16.mxu0 0
    %445 = vmatpush1.bf16.msra.mxu0 %v221
    %446 = vmatprep.subr.bf16.mxu0 0
    %447 = vmatpush1.bf16.msra.mxu0 %v218
    %448 = vmatprep.subr.bf16.mxu0 0
    %449 = vmatpush1.bf16.msra.mxu0 %v215
    %450 = vmatprep.subr.bf16.mxu0 0
    %451 = vmatpush1.bf16.msra.mxu0 %v212
    %452 = vmatprep.subr.bf16.mxu0 0
    %453 = vmatpush1.bf16.msra.mxu0 %v209
    %454 = vmatprep.subr.bf16.mxu0 0
    %455 = vmatpush1.bf16.msra.mxu0 %v206
    %456 = vmatprep.subr.bf16.mxu0 0
    %457 = vmatpush1.bf16.msra.mxu0 %v203
    %458 = vmatprep.subr.bf16.mxu0 0
    %459 = vmatpush2.bf16.msra.mxu0 0
    %460 = vmatprep.subr.bf16.mxu0 0
    %461 = vmatpush2.bf16.msra.mxu0 0
    %462 = vmatprep.subr.bf16.mxu0 0
    %463 = vmatpush2.bf16.msra.mxu0 0
    %464 = vmatprep.subr.bf16.mxu0 0
    %465 = vmatpush2.bf16.msra.mxu0 0
    %466 = vmatprep.subr.bf16.mxu0 0
    %467 = vmatpush2.bf16.msra.mxu0 0
    %468 = vmatprep.subr.bf16.mxu0 0
    %469 = vmatpush2.bf16.msra.mxu0 0
    %470 = vmatprep.subr.bf16.mxu0 0
    %471 = vmatpush2.bf16.msra.mxu0 0
    %472 = vmatprep.subr.bf16.mxu0 0
    %473 = vmatpush2.bf16.msra.mxu0 0
    %474 = vmatprep.mubr.bf16.mxu0 0
    %475 = vmatmul.mubr.bf16.gmra.mxu0 %v73
    %v476 = vpop.f32.mrf.mxu0
    %v477 = vadd.f32 0.0, %v476
    %v478 = vpop.f32.mrf.mxu0
    %v479 = vpop.f32.mrf.mxu0
    %v480 = vadd.f32 0.0, %v479
    %v481 = vpop.f32.mrf.mxu0
    %482 = vmatprep.mubr.bf16.mxu0 0
    %483 = vmatmul.mubr.bf16.gmra.mxu0 %v74
    %v484 = vpop.f32.mrf.mxu0
    %v485 = vadd.f32 0.0, %v484
    %v486 = vpop.f32.mrf.mxu0
    %v487 = vpop.f32.mrf.mxu0
    %v488 = vadd.f32 0.0, %v487
    %v489 = vpop.f32.mrf.mxu0
    %490 = vmatprep.mubr.bf16.mxu0 0
    %491 = vmatmul.mubr.bf16.gmra.mxu0 %v75
    %v492 = vpop.f32.mrf.mxu0
    %v493 = vadd.f32 0.0, %v492
    %v494 = vpop.f32.mrf.mxu0
    %v495 = vpop.f32.mrf.mxu0
    %v496 = vadd.f32 0.0, %v495
    %v497 = vpop.f32.mrf.mxu0
    %498 = vmatprep.mubr.bf16.mxu0 0
    %499 = vmatmul.mubr.bf16.gmra.mxu0 %v76
    %v500 = vpop.f32.mrf.mxu0
    %v501 = vadd.f32 0.0, %v500
    %v502 = vpop.f32.mrf.mxu0
    %v503 = vpop.f32.mrf.mxu0
    %v504 = vadd.f32 0.0, %v503
    %v505 = vpop.f32.mrf.mxu0
    %506 = vmatprep.mubr.bf16.mxu0 0
    %507 = vmatmul.mubr.bf16.gmra.mxu0 %v77
    %v508 = vpop.f32.mrf.mxu0
    %v509 = vadd.f32 0.0, %v508
    %v510 = vpop.f32.mrf.mxu0
    %v511 = vpop.f32.mrf.mxu0
    %v512 = vadd.f32 0.0, %v511
    %v513 = vpop.f32.mrf.mxu0
    %514 = vmatprep.mubr.bf16.mxu0 0
    %515 = vmatmul.mubr.bf16.gmra.mxu0 %v78
    %v516 = vpop.f32.mrf.mxu0
    %v517 = vadd.f32 0.0, %v516
    %v518 = vpop.f32.mrf.mxu0
    %v519 = vpop.f32.mrf.mxu0
    %v520 = vadd.f32 0.0, %v519
    %v521 = vpop.f32.mrf.mxu0
    %522 = vmatprep.mubr.bf16.mxu0 0
    %523 = vmatmul.mubr.bf16.gmra.mxu0 %v79
    %v524 = vpop.f32.mrf.mxu0
    %v525 = vadd.f32 0.0, %v524
    %v526 = vpop.f32.mrf.mxu0
    %v527 = vpop.f32.mrf.mxu0
    %v528 = vadd.f32 0.0, %v527
    %v529 = vpop.f32.mrf.mxu0
    %530 = vmatprep.mubr.bf16.mxu0 0
    %531 = vmatmul.mubr.bf16.gmra.mxu0 %v80
    %v532 = vpop.f32.mrf.mxu0
    %v533 = vadd.f32 0.0, %v532
    %v534 = vpop.f32.mrf.mxu0
    %v535 = vpop.f32.mrf.mxu0
    %v536 = vadd.f32 0.0, %v535
    %v537 = vpop.f32.mrf.mxu0
    %538 = vmatprep.mubr.bf16.mxu0 0
    %539 = vmatmul.mubr.bf16.gmra.mxu0 %v81
    %v540 = vpop.f32.mrf.mxu0
    %v541 = vadd.f32 0.0, %v540
    %v542 = vpop.f32.mrf.mxu0
    %v543 = vpop.f32.mrf.mxu0
    %v544 = vadd.f32 0.0, %v543
    %v545 = vpop.f32.mrf.mxu0
    %546 = vmatprep.mubr.bf16.mxu0 0
    %547 = vmatmul.mubr.bf16.gmra.mxu0 %v82
    %v548 = vpop.f32.mrf.mxu0
    %v549 = vadd.f32 0.0, %v548
    %v550 = vpop.f32.mrf.mxu0
    %v551 = vpop.f32.mrf.mxu0
    %v552 = vadd.f32 0.0, %v551
    %v553 = vpop.f32.mrf.mxu0
    %554 = vmatprep.mubr.bf16.mxu0 0
    %555 = vmatmul.mubr.bf16.gmra.mxu0 %v83
    %v556 = vpop.f32.mrf.mxu0
    %v557 = vadd.f32 0.0, %v556
    %v558 = vpop.f32.mrf.mxu0
    %v559 = vpop.f32.mrf.mxu0
    %v560 = vadd.f32 0.0, %v559
    %v561 = vpop.f32.mrf.mxu0
    %562 = vmatprep.mubr.bf16.mxu0 0
    %563 = vmatmul.mubr.bf16.gmra.mxu0 %v84
    %v564 = vpop.f32.mrf.mxu0
    %v565 = vadd.f32 0.0, %v564
    %v566 = vpop.f32.mrf.mxu0
    %v567 = vpop.f32.mrf.mxu0
    %v568 = vadd.f32 0.0, %v567
    %v569 = vpop.f32.mrf.mxu0
    %570 = vmatprep.mubr.bf16.mxu0 0
    %571 = vmatmul.mubr.bf16.gmra.mxu0 %v85
    %v572 = vpop.f32.mrf.mxu0
    %v573 = vadd.f32 0.0, %v572
    %v574 = vpop.f32.mrf.mxu0
    %v575 = vpop.f32.mrf.mxu0
    %v576 = vadd.f32 0.0, %v575
    %v577 = vpop.f32.mrf.mxu0
    %578 = vmatprep.mubr.bf16.mxu0 0
    %579 = vmatmul.mubr.bf16.gmra.mxu0 %v86
    %v580 = vpop.f32.mrf.mxu0
    %v581 = vadd.f32 0.0, %v580
    %v582 = vpop.f32.mrf.mxu0
    %v583 = vpop.f32.mrf.mxu0
    %v584 = vadd.f32 0.0, %v583
    %v585 = vpop.f32.mrf.mxu0
    %586 = vmatprep.mubr.bf16.mxu0 0
    %587 = vmatmul.mubr.bf16.gmra.mxu0 %v87
    %v588 = vpop.f32.mrf.mxu0
    %v589 = vadd.f32 0.0, %v588
    %v590 = vpop.f32.mrf.mxu0
    %v591 = vpop.f32.mrf.mxu0
    %v592 = vadd.f32 0.0, %v591
    %v593 = vpop.f32.mrf.mxu0
    %594 = vmatprep.mubr.bf16.mxu0 0
    %595 = vmatmul.mubr.bf16.gmra.mxu0 %v88
    %v596 = vpop.f32.mrf.mxu0
    %v597 = vadd.f32 0.0, %v596
    %v598 = vpop.f32.mrf.mxu0
    %v599 = vpop.f32.mrf.mxu0
    %v600 = vadd.f32 0.0, %v599
    %v601 = vpop.f32.mrf.mxu0
    %602 = vdwg.mxu0
    %v603 = vpack.c.bf16 %v288, %v284
    %v604 = vpack.c.bf16 %v290, %v286
    %v605 = vpack.c.bf16 %v480, %v477
    %v606 = vpack.c.bf16 %v298, %v294
    %v607 = vpack.c.bf16 %v300, %v296
    %v608 = vpack.c.bf16 %v488, %v485
    %v609 = vpack.c.bf16 %v308, %v304
    %v610 = vpack.c.bf16 %v310, %v306
    %v611 = vpack.c.bf16 %v496, %v493
    %v612 = vpack.c.bf16 %v318, %v314
    %v613 = vpack.c.bf16 %v320, %v316
    %v614 = vpack.c.bf16 %v504, %v501
    %v615 = vpack.c.bf16 %v328, %v324
    %v616 = vpack.c.bf16 %v330, %v326
    %v617 = vpack.c.bf16 %v512, %v509
    %v618 = vpack.c.bf16 %v338, %v334
    %v619 = vpack.c.bf16 %v340, %v336
    %v620 = vpack.c.bf16 %v520, %v517
    %v621 = vpack.c.bf16 %v348, %v344
    %v622 = vpack.c.bf16 %v350, %v346
    %v623 = vpack.c.bf16 %v528, %v525
    %v624 = vpack.c.bf16 %v358, %v354
    %v625 = vpack.c.bf16 %v360, %v356
    %v626 = vpack.c.bf16 %v536, %v533
    %v627 = vpack.c.bf16 %v368, %v364
    %v628 = vpack.c.bf16 %v370, %v366
    %v629 = vpack.c.bf16 %v544, %v541
    %v630 = vpack.c.bf16 %v378, %v374
    %v631 = vpack.c.bf16 %v380, %v376
    %v632 = vpack.c.bf16 %v552, %v549
    %v633 = vpack.c.bf16 %v388, %v384
    %v634 = vpack.c.bf16 %v390, %v386
    %v635 = vpack.c.bf16 %v560, %v557
    %v636 = vpack.c.bf16 %v398, %v394
    %v637 = vpack.c.bf16 %v400, %v396
    %v638 = vpack.c.bf16 %v568, %v565
    %v639 = vpack.c.bf16 %v408, %v404
    %v640 = vpack.c.bf16 %v410, %v406
    %v641 = vpack.c.bf16 %v576, %v573
    %v642 = vpack.c.bf16 %v418, %v414
    %v643 = vpack.c.bf16 %v420, %v416
    %v644 = vpack.c.bf16 %v584, %v581
    %v645 = vpack.c.bf16 %v428, %v424
    %v646 = vpack.c.bf16 %v430, %v426
    %v647 = vpack.c.bf16 %v592, %v589
    %v648 = vpack.c.bf16 %v438, %v434
    %v649 = vpack.c.bf16 %v440, %v436
    %v650 = vpack.c.bf16 %v600, %v597
    %v699 = vunpack.c.l.b16 %v603
    %v700 = vunpack.c.l.b16 %v604
    %v701 = vunpack.c.l.b16 %v605
    %v702 = vunpack.c.h.b16 %v603
    %v703 = vunpack.c.h.b16 %v604
    %v704 = vunpack.c.h.b16 %v605
    %v705 = vunpack.c.l.b16 %v606
    %v706 = vunpack.c.l.b16 %v607
    %v707 = vunpack.c.l.b16 %v608
    %v708 = vunpack.c.h.b16 %v606
    %v709 = vunpack.c.h.b16 %v607
    %v710 = vunpack.c.h.b16 %v608
    %v711 = vunpack.c.l.b16 %v609
    %v712 = vunpack.c.l.b16 %v610
    %v713 = vunpack.c.l.b16 %v611
    %v714 = vunpack.c.h.b16 %v609
    %v715 = vunpack.c.h.b16 %v610
    %v716 = vunpack.c.h.b16 %v611
    %v717 = vunpack.c.l.b16 %v612
    %v718 = vunpack.c.l.b16 %v613
    %v719 = vunpack.c.l.b16 %v614
    %v720 = vunpack.c.h.b16 %v612
    %v721 = vunpack.c.h.b16 %v613
    %v722 = vunpack.c.h.b16 %v614
    %v723 = vunpack.c.l.b16 %v615
    %v724 = vunpack.c.l.b16 %v616
    %v725 = vunpack.c.l.b16 %v617
    %v726 = vunpack.c.h.b16 %v615
    %v727 = vunpack.c.h.b16 %v616
    %v728 = vunpack.c.h.b16 %v617
    %v729 = vunpack.c.l.b16 %v618
    %v730 = vunpack.c.l.b16 %v619
    %v731 = vunpack.c.l.b16 %v620
    %v732 = vunpack.c.h.b16 %v618
    %v733 = vunpack.c.h.b16 %v619
    %v734 = vunpack.c.h.b16 %v620
    %v735 = vunpack.c.l.b16 %v621
    %v736 = vunpack.c.l.b16 %v622
    %v737 = vunpack.c.l.b16 %v623
    %v738 = vunpack.c.h.b16 %v621
    %v739 = vunpack.c.h.b16 %v622
    %v740 = vunpack.c.h.b16 %v623
    %v741 = vunpack.c.l.b16 %v624
    %v742 = vunpack.c.l.b16 %v625
    %v743 = vunpack.c.l.b16 %v626
    %v744 = vunpack.c.h.b16 %v624
    %v745 = vunpack.c.h.b16 %v625
    %v746 = vunpack.c.h.b16 %v626
    %v747 = vunpack.c.l.b16 %v627
    %v748 = vunpack.c.l.b16 %v628
    %v749 = vunpack.c.l.b16 %v629
    %v750 = vunpack.c.h.b16 %v627
    %v751 = vunpack.c.h.b16 %v628
    %v752 = vunpack.c.h.b16 %v629
    %v753 = vunpack.c.l.b16 %v630
    %v754 = vunpack.c.l.b16 %v631
    %v755 = vunpack.c.l.b16 %v632
    %v756 = vunpack.c.h.b16 %v630
    %v757 = vunpack.c.h.b16 %v631
    %v758 = vunpack.c.h.b16 %v632
    %v759 = vunpack.c.l.b16 %v633
    %v760 = vunpack.c.l.b16 %v634
    %v761 = vunpack.c.l.b16 %v635
    %v762 = vunpack.c.h.b16 %v633
    %v763 = vunpack.c.h.b16 %v634
    %v764 = vunpack.c.h.b16 %v635
    %v765 = vunpack.c.l.b16 %v636
    %v766 = vunpack.c.l.b16 %v637
    %v767 = vunpack.c.l.b16 %v638
    %v768 = vunpack.c.h.b16 %v636
    %v769 = vunpack.c.h.b16 %v637
    %v770 = vunpack.c.h.b16 %v638
    %v771 = vunpack.c.l.b16 %v639
    %v772 = vunpack.c.l.b16 %v640
    %v773 = vunpack.c.l.b16 %v641
    %v774 = vunpack.c.h.b16 %v639
    %v775 = vunpack.c.h.b16 %v640
    %v776 = vunpack.c.h.b16 %v641
    %v777 = vunpack.c.l.b16 %v642
    %v778 = vunpack.c.l.b16 %v643
    %v779 = vunpack.c.l.b16 %v644
    %v780 = vunpack.c.h.b16 %v642
    %v781 = vunpack.c.h.b16 %v643
    %v782 = vunpack.c.h.b16 %v644
    %v783 = vunpack.c.l.b16 %v645
    %v784 = vunpack.c.l.b16 %v646
    %v785 = vunpack.c.l.b16 %v647
    %v786 = vunpack.c.h.b16 %v645
    %v787 = vunpack.c.h.b16 %v646
    %v788 = vunpack.c.h.b16 %v647
    %v789 = vunpack.c.l.b16 %v648
    %v790 = vunpack.c.l.b16 %v649
    %v791 = vunpack.c.l.b16 %v650
    %v792 = vunpack.c.h.b16 %v648
    %v793 = vunpack.c.h.b16 %v649
    %v794 = vunpack.c.h.b16 %v650
    %v795 = vpack.c.b16 %v700, %v699
    %v796 = vpack.c.b16 %v701, %v701
    %v797 = vpack.c.b16 %v703, %v702
    %v798 = vpack.c.b16 %v704, %v704
    %v799 = vpack.c.b16 %v706, %v705
    %v800 = vpack.c.b16 %v707, %v707
    %v801 = vpack.c.b16 %v709, %v708
    %v802 = vpack.c.b16 %v710, %v710
    %v803 = vpack.c.b16 %v712, %v711
    %v804 = vpack.c.b16 %v713, %v713
    %v805 = vpack.c.b16 %v715, %v714
    %v806 = vpack.c.b16 %v716, %v716
    %v807 = vpack.c.b16 %v718, %v717
    %v808 = vpack.c.b16 %v719, %v719
    %v809 = vpack.c.b16 %v721, %v720
    %v810 = vpack.c.b16 %v722, %v722
    %v811 = vpack.c.b16 %v724, %v723
    %v812 = vpack.c.b16 %v725, %v725
    %v813 = vpack.c.b16 %v727, %v726
    %v814 = vpack.c.b16 %v728, %v728
    %v815 = vpack.c.b16 %v730, %v729
    %v816 = vpack.c.b16 %v731, %v731
    %v817 = vpack.c.b16 %v733, %v732
    %v818 = vpack.c.b16 %v734, %v734
    %v819 = vpack.c.b16 %v736, %v735
    %v820 = vpack.c.b16 %v737, %v737
    %v821 = vpack.c.b16 %v739, %v738
    %v822 = vpack.c.b16 %v740, %v740
    %v823 = vpack.c.b16 %v742, %v741
    %v824 = vpack.c.b16 %v743, %v743
    %v825 = vpack.c.b16 %v745, %v744
    %v826 = vpack.c.b16 %v746, %v746
    %v827 = vpack.c.b16 %v748, %v747
    %v828 = vpack.c.b16 %v749, %v749
    %v829 = vpack.c.b16 %v751, %v750
    %v830 = vpack.c.b16 %v752, %v752
    %v831 = vpack.c.b16 %v754, %v753
    %v832 = vpack.c.b16 %v755, %v755
    %v833 = vpack.c.b16 %v757, %v756
    %v834 = vpack.c.b16 %v758, %v758
    %v835 = vpack.c.b16 %v760, %v759
    %v836 = vpack.c.b16 %v761, %v761
    %v837 = vpack.c.b16 %v763, %v762
    %v838 = vpack.c.b16 %v764, %v764
    %v839 = vpack.c.b16 %v766, %v765
    %v840 = vpack.c.b16 %v767, %v767
    %v841 = vpack.c.b16 %v769, %v768
    %v842 = vpack.c.b16 %v770, %v770
    %v843 = vpack.c.b16 %v772, %v771
    %v844 = vpack.c.b16 %v773, %v773
    %v845 = vpack.c.b16 %v775, %v774
    %v846 = vpack.c.b16 %v776, %v776
    %v847 = vpack.c.b16 %v778, %v777
    %v848 = vpack.c.b16 %v779, %v779
    %v849 = vpack.c.b16 %v781, %v780
    %v850 = vpack.c.b16 %v782, %v782
    %v851 = vpack.c.b16 %v784, %v783
    %v852 = vpack.c.b16 %v785, %v785
    %v853 = vpack.c.b16 %v787, %v786
    %v854 = vpack.c.b16 %v788, %v788
    %v855 = vpack.c.b16 %v790, %v789
    %v856 = vpack.c.b16 %v791, %v791
    %v857 = vpack.c.b16 %v793, %v792
    %v858 = vpack.c.b16 %v794, %v794
    %923 = vst [vmem:[#allocation7] sm:$0xff] %v795
    %924 = vst [vmem:[#allocation7 + $0x8] sm:$0xf] %v796
    %925 = vst [vmem:[#allocation7 + $0xc] sm:$0xff] %v797
    %926 = vst [vmem:[#allocation7 + $0x14] sm:$0xf] %v798
    %927 = vst [vmem:[#allocation7 + $0x18] sm:$0xff] %v799
    %928 = vst [vmem:[#allocation7 + $0x20] sm:$0xf] %v800
    %929 = vst [vmem:[#allocation7 + $0x24] sm:$0xff] %v801
    %930 = vst [vmem:[#allocation7 + $0x2c] sm:$0xf] %v802
    %931 = vst [vmem:[#allocation7 + $0x30] sm:$0xff] %v803
    %932 = vst [vmem:[#allocation7 + $0x38] sm:$0xf] %v804
    %933 = vst [vmem:[#allocation7 + $0x3c] sm:$0xff] %v805
    %934 = vst [vmem:[#allocation7 + $0x44] sm:$0xf] %v806
    %935 = vst [vmem:[#allocation7 + $0x48] sm:$0xff] %v807
    %936 = vst [vmem:[#allocation7 + $0x50] sm:$0xf] %v808
    %937 = vst [vmem:[#allocation7 + $0x54] sm:$0xff] %v809
    %938 = vst [vmem:[#allocation7 + $0x5c] sm:$0xf] %v810
    %939 = vst [vmem:[#allocation7 + $0x60] sm:$0xff] %v811
    %940 = vst [vmem:[#allocation7 + $0x68] sm:$0xf] %v812
    %941 = vst [vmem:[#allocation7 + $0x6c] sm:$0xff] %v813
    %942 = vst [vmem:[#allocation7 + $0x74] sm:$0xf] %v814
    %943 = vst [vmem:[#allocation7 + $0x78] sm:$0xff] %v815
    %944 = vst [vmem:[#allocation7 + $0x80] sm:$0xf] %v816
    %945 = vst [vmem:[#allocation7 + $0x84] sm:$0xff] %v817
    %946 = vst [vmem:[#allocation7 + $0x8c] sm:$0xf] %v818
    %947 = vst [vmem:[#allocation7 + $0x90] sm:$0xff] %v819
    %948 = vst [vmem:[#allocation7 + $0x98] sm:$0xf] %v820
    %949 = vst [vmem:[#allocation7 + $0x9c] sm:$0xff] %v821
    %950 = vst [vmem:[#allocation7 + $0xa4] sm:$0xf] %v822
    %951 = vst [vmem:[#allocation7 + $0xa8] sm:$0xff] %v823
    %952 = vst [vmem:[#allocation7 + $0xb0] sm:$0xf] %v824
    %953 = vst [vmem:[#allocation7 + $0xb4] sm:$0xff] %v825
    %954 = vst [vmem:[#allocation7 + $0xbc] sm:$0xf] %v826
    %955 = vst [vmem:[#allocation7 + $0xc0] sm:$0xff] %v827
    %956 = vst [vmem:[#allocation7 + $0xc8] sm:$0xf] %v828
    %957 = vst [vmem:[#allocation7 + $0xcc] sm:$0xff] %v829
    %958 = vst [vmem:[#allocation7 + $0xd4] sm:$0xf] %v830
    %959 = vst [vmem:[#allocation7 + $0xd8] sm:$0xff] %v831
    %960 = vst [vmem:[#allocation7 + $0xe0] sm:$0xf] %v832
    %961 = vst [vmem:[#allocation7 + $0xe4] sm:$0xff] %v833
    %962 = vst [vmem:[#allocation7 + $0xec] sm:$0xf] %v834
    %963 = vst [vmem:[#allocation7 + $0xf0] sm:$0xff] %v835
    %964 = vst [vmem:[#allocation7 + $0xf8] sm:$0xf] %v836
    %965 = vst [vmem:[#allocation7 + $0xfc] sm:$0xff] %v837
    %966 = vst [vmem:[#allocation7 + $0x104] sm:$0xf] %v838
    %967 = vst [vmem:[#allocation7 + $0x108] sm:$0xff] %v839
    %968 = vst [vmem:[#allocation7 + $0x110] sm:$0xf] %v840
    %969 = vst [vmem:[#allocation7 + $0x114] sm:$0xff] %v841
    %970 = vst [vmem:[#allocation7 + $0x11c] sm:$0xf] %v842
    %971 = vst [vmem:[#allocation7 + $0x120] sm:$0xff] %v843
    %972 = vst [vmem:[#allocation7 + $0x128] sm:$0xf] %v844
    %973 = vst [vmem:[#allocation7 + $0x12c] sm:$0xff] %v845
    %974 = vst [vmem:[#allocation7 + $0x134] sm:$0xf] %v846
    %975 = vst [vmem:[#allocation7 + $0x138] sm:$0xff] %v847
    %976 = vst [vmem:[#allocation7 + $0x140] sm:$0xf] %v848
    %977 = vst [vmem:[#allocation7 + $0x144] sm:$0xff] %v849
    %978 = vst [vmem:[#allocation7 + $0x14c] sm:$0xf] %v850
    %979 = vst [vmem:[#allocation7 + $0x150] sm:$0xff] %v851
    %980 = vst [vmem:[#allocation7 + $0x158] sm:$0xf] %v852
    %981 = vst [vmem:[#allocation7 + $0x15c] sm:$0xff] %v853
    %982 = vst [vmem:[#allocation7 + $0x164] sm:$0xf] %v854
    %983 = vst [vmem:[#allocation7 + $0x168] sm:$0xff] %v855
    %984 = vst [vmem:[#allocation7 + $0x170] sm:$0xf] %v856
    %985 = vst [vmem:[#allocation7 + $0x174] sm:$0xff] %v857
    %986 = vst [vmem:[#allocation7 + $0x17c] sm:$0xf] %v858
    // Predicated region
    $region18: #{tpu_custom_call.1} parent=1 // pred_check
      _
    $region19: #{tpu_custom_call.1} parent=1 // pred_check_branch
      %988 = sbr.rel (0) target = $region21
    $region20: #{tpu_custom_call.1} parent=1 // pred_region
      %s990 = ssub.s32 6144, 6144
      %991 = vsyncadd [#allocation4], %s990
      %s992 = sshll.u32 [#allocation7], 4
      %s993 = int_to_ptr.vmem [resolvable:$true] %s992
      %998 = dma.vmem_to_hbm [thread:$0]  %s993, 6144, %s2, [#allocation4], 192, 192, 12
    $region21: #{tpu_custom_call.1} parent=1 // pred_fallthru
      _
    // Predicated region
    $region22: #{tpu_custom_call.1} parent=1 // pred_check
      _
    $region23: #{tpu_custom_call.1} parent=1 // pred_check_branch
      %1000 = sbr.rel (0) target = $region25
    $region24: #{tpu_custom_call.1} parent=1 // pred_region
      %1001 = dma.done [#allocation4], 6144
    $region25: #{tpu_custom_call.1} parent=1 // pred_fallthru
      _
    %1002 = vsyncpa [#allocation3], 1
    %1003 = vsyncpa [#allocation6], 1
    %1004 = vsyncpa [#allocation4], 1

</llo_original>
